<compile_context>
chip_gen: v6e
topology: v6e:2x2x1
jax: 0.10.0
libtpu: 0.0.40
codegen_flags: <defaults>
</compile_context>

<pallas_src>
import math

import jax
import jax.numpy as jnp
from jax.experimental import pallas as pl
from jax.experimental.pallas import tpu as pltpu


# ----------------------------- tiling helpers -------------------------------

def _round_up(x: int, m: int) -> int:
    return ((x + m - 1) // m) * m


def _tile_m(batch: int):
    tm = min(128, _round_up(batch, 8))
    return tm, _round_up(batch, tm)


def _tile_k(n_input: int):
    tk = min(512, _round_up(n_input, 128))
    return tk, _round_up(n_input, tk)


def _tile_n(n_output: int):
    tn = min(256, _round_up(n_output, 128))
    return tn, _round_up(n_output, tn)


# ------------------------------- the kernel ---------------------------------

def _matmul_bias_kernel(x_ref, w_ref, b_ref, o_ref, acc_ref):
    """Tiled y = x @ W + b with an f32 VMEM accumulator over the K grid axis."""
    k = pl.program_id(2)

    @pl.when(k == 0)
    def _init():
        # Fold the bias add into the accumulator init: epilogue is then just
        # a cast + lane-dense store.
        acc_ref[...] = jnp.broadcast_to(b_ref[...], acc_ref.shape)

    acc_ref[...] += jnp.dot(
        x_ref[...], w_ref[...], preferred_element_type=jnp.float32)

    @pl.when(k == pl.num_programs(2) - 1)
    def _finalize():
        o_ref[...] = acc_ref[...].astype(o_ref.dtype)


# ---------------------- one-time parameter preparation ----------------------

def prepare_packed_params(w_fixed, w_trainable=None, b_fixed=None,
                          b_trainable=None, compute_dtype=None):
    """Pack weights/biases once into a lane-dense, kernel-ready layout.

    Args:
      w_fixed:     [O_fixed, I]  (PyTorch nn.Linear layout).
      w_trainable: [O_train, I] or None.
      b_fixed:     [O_fixed] trainable bias added to the fixed output, or None.
      b_trainable: [O_train] or None.
      compute_dtype: dtype of the packed weight (e.g. bf16); defaults to
        w_fixed.dtype.

    Returns:
      (w_packed [K_pad, N_pad], b_packed [1, N_pad] f32, n_out)
    """
    n_fixed, n_input = w_fixed.shape
    n_train = 0 if w_trainable is None else int(w_trainable.shape[0])
    n_out = n_fixed + n_train
    if compute_dtype is None:
        compute_dtype = w_fixed.dtype

    _, K = _tile_k(n_input)
    _, N = _tile_n(n_out)

    if n_train > 0:
        w_cat = jnp.concatenate([w_fixed, w_trainable], axis=0)      # [O, I]
    else:
        w_cat = w_fixed
    w_io = jnp.transpose(w_cat, (1, 0)).astype(compute_dtype)        # [I, O]
    w_packed = jnp.zeros((K, N), compute_dtype).at[:n_input, :n_out].set(w_io)

    b_parts = [b_fixed if b_fixed is not None
               else jnp.zeros((n_fixed,), jnp.float32)]
    if n_train > 0:
        b_parts.append(b_trainable if b_trainable is not None
                       else jnp.zeros((n_train,), jnp.float32))
    b_cat = jnp.concatenate(b_parts, axis=0).astype(jnp.float32)
    b_packed = jnp.zeros((1, N), jnp.float32).at[0, :n_out].set(b_cat)

    return w_packed, b_packed, n_out


# ------------------------------ forward pass --------------------------------

def output_partly_trainable_linear_fwd(x, w_packed, b_packed, n_out):
    """Hot-path forward: pad x, run the tiled Pallas matmul, slice the result.

    Args:
      x:        [B, I] input.
      w_packed: [K_pad, N_pad] packed weight from prepare_packed_params.
      b_packed: [1, N_pad] f32 packed bias.
      n_out:    logical output width (O_fixed + O_train).

    Returns:
      [B, n_out] output matching torch.cat([fixed, trainable], -1).
    """
    B, I = x.shape
    K, N = w_packed.shape
    tm, M = _tile_m(B)
    tk, K_expect = _tile_k(I)
    tn, N_expect = _tile_n(n_out)
    assert (K, N) == (K_expect, N_expect), "packed params do not match shapes"

    if (M, K) != (B, I):
        # Zero-pad: padded K columns hit zero weight rows, padded rows/cols
        # of the output are sliced off below.
        x = jnp.pad(x, ((0, M - B), (0, K - I)))

    grid = (M // tm, N // tn, K // tk)
    itemsize = jnp.dtype(x.dtype).itemsize

    out = pl.pallas_call(
        _matmul_bias_kernel,
        out_shape=jax.ShapeDtypeStruct((M, N), x.dtype),
        grid=grid,
        in_specs=[
            pl.BlockSpec((tm, tk), lambda m, n, k: (m, k)),   # x tile
            pl.BlockSpec((tk, tn), lambda m, n, k: (k, n)),   # W tile
            pl.BlockSpec((1, tn), lambda m, n, k: (0, n)),    # bias tile
        ],
        out_specs=pl.BlockSpec((tm, tn), lambda m, n, k: (m, n)),
        scratch_shapes=[pltpu.VMEM((tm, tn), jnp.float32)],
        compiler_params=pltpu.CompilerParams(
            dimension_semantics=("parallel", "parallel", "arbitrary")),
        cost_estimate=pl.CostEstimate(
            flops=2 * M * N * K,
            transcendentals=0,
            bytes_accessed=(M * K + K * N + M * N) * itemsize + 4 * N),
    )(x, w_packed, b_packed)

    return out[:B, :n_out]


def output_partly_trainable_linear(x, w_fixed, w_trainable=None,
                                   b_fixed=None, b_trainable=None):
    """Convenience wrapper matching the module API (packs params, then runs).

    In a real training/inference loop, call prepare_packed_params once and
    reuse (w_packed, b_packed) across forward calls.
    """
    w_packed, b_packed, n_out = prepare_packed_params(
        w_fixed, w_trainable, b_fixed, b_trainable, compute_dtype=x.dtype)
    return output_partly_trainable_linear_fwd(x, w_packed, b_packed, n_out)


# ------------------------------- reference ----------------------------------

def _reference(x, w_fixed, w_trainable, b_fixed, b_trainable):
    """Pure-JAX reference mirroring the PyTorch forward exactly."""
    fixed_out = x @ w_fixed.T
    if b_fixed is not None:
        fixed_out = fixed_out + b_fixed
    if w_trainable is not None and w_trainable.shape[0] > 0:
        train_out = x @ w_trainable.T
        if b_trainable is not None:
            train_out = train_out + b_trainable
        return jnp.concatenate([fixed_out, train_out], axis=-1)
    return fixed_out


# --------------------------------- demo --------------------------------------

if __name__ == "__main__":
    key = jax.random.PRNGKey(0)

    def make_case(key, B, n_input, n_fixed, n_train, bias):
        k1, k2, k3, k4, k5 = jax.random.split(key, 5)
        bound = 1.0 / math.sqrt(n_input)
        x = jax.random.normal(k1, (B, n_input), dtype=jnp.float32)
        w_fixed = jax.random.uniform(
            k2, (n_fixed, n_input), jnp.float32, -bound, bound)
        w_train = (jax.random.uniform(
            k3, (n_train, n_input), jnp.float32, -bound, bound)
            if n_train > 0 else None)
        b_fixed = (jax.random.uniform(
            k4, (n_fixed,), jnp.float32, -bound, bound) if bias else None)
        b_train = (jax.random.uniform(
            k5, (n_train,), jnp.float32, -bound, bound)
            if (bias and n_train > 0) else None)
        return x, w_fixed, w_train, b_fixed, b_train

    kA, kB, kC = jax.random.split(key, 3)

    # Case 1: fixed + trainable outputs, with bias.
    x, wf, wt, bf, bt = make_case(kA, B=8, n_input=32, n_fixed=16,
                                  n_train=16, bias=True)
    y = jax.block_until_ready(output_partly_trainable_linear(x, wf, wt, bf, bt))
    y_ref = _reference(x, wf, wt, bf, bt)
    assert y.shape == (8, 32)
    assert jnp.allclose(y, y_ref, atol=1e-5, rtol=1e-5), "case 1 mismatch"

    # Case 2: fixed-only outputs (n_trainable_output = 0) with trainable bias.
    x2, wf2, wt2, bf2, bt2 = make_case(kB, B=8, n_input=32, n_fixed=16,
                                       n_train=0, bias=True)
    y2 = jax.block_until_ready(
        output_partly_trainable_linear(x2, wf2, wt2, bf2, bt2))
    y2_ref = _reference(x2, wf2, wt2, bf2, bt2)
    assert y2.shape == (8, 16)
    assert jnp.allclose(y2, y2_ref, atol=1e-5, rtol=1e-5), "case 2 mismatch"

    # Case 3: no bias, both parts, non-aligned dims (exercises padding path).
    x3, wf3, wt3, bf3, bt3 = make_case(kC, B=5, n_input=40, n_fixed=24,
                                       n_train=8, bias=False)
    y3 = jax.block_until_ready(
        output_partly_trainable_linear(x3, wf3, wt3, bf3, bt3))
    y3_ref = _reference(x3, wf3, wt3, bf3, bt3)
    assert y3.shape == (5, 32)
    assert jnp.allclose(y3, y3_ref, atol=1e-5, rtol=1e-5), "case 3 mismatch"

    print("KERNEL_OK")
</pallas_src>

<mosaic_0001>
module attributes {stable_mosaic.version = 11 : i64} {
  func.func @_matmul_bias_kernel(%arg0: i32, %arg1: i32, %arg2: i32, %arg3: memref<8x128xf32, #tpu.memory_space<vmem>>, %arg4: memref<128x128xf32, #tpu.memory_space<vmem>>, %arg5: memref<1x128xf32, #tpu.memory_space<vmem>>, %arg6: memref<8x128xf32, #tpu.memory_space<vmem>>, %arg7: memref<8x128xf32, #tpu.memory_space<vmem>>) attributes {dimension_semantics = [#tpu.dimension_semantics<parallel>, #tpu.dimension_semantics<parallel>, #tpu.dimension_semantics<arbitrary>], iteration_bounds = array<i64: 1, 1, 1>, scalar_prefetch = 0 : i64, scratch_operands = 1 : i64, tpu.core_type = #tpu.core_type<tc>, window_params = [{transform_indices = @transform_0, window_bounds = array<i64: 8, 128>}, {transform_indices = @transform_1, window_bounds = array<i64: 128, 128>}, {transform_indices = @transform_2, window_bounds = array<i64: 1, 128>}, {transform_indices = @transform_3, window_bounds = array<i64: 8, 128>}]} {
    %c0_i32 = arith.constant 0 : i32
    %0 = arith.cmpi eq, %arg2, %c0_i32 : i32
    %1 = arith.extui %0 : i1 to i32
    %c0_i32_0 = arith.constant 0 : i32
    %2 = arith.cmpi ne, %1, %c0_i32_0 : i32
    scf.if %2 {
      %c0_10 = arith.constant 0 : index
      %c0_11 = arith.constant 0 : index
      %12 = vector.load %arg5[%c0_10, %c0_11] : memref<1x128xf32, #tpu.memory_space<vmem>>, vector<1x128xf32>
      %13 = vector.shape_cast %12 : vector<1x128xf32> to vector<1x128xf32>
      %14 = vector.broadcast %13 : vector<1x128xf32> to vector<8x128xf32>
      %c0_12 = arith.constant 0 : index
      %c0_13 = arith.constant 0 : index
      %15 = vector.load %arg7[%c0_12, %c0_13] : memref<8x128xf32, #tpu.memory_space<vmem>>, vector<8x128xf32>
      tpu.vector_store %arg7[%c0_12, %c0_13], %14 {strides = array<i32>} : memref<8x128xf32, #tpu.memory_space<vmem>>, vector<8x128xf32>,
    } else {
    }
    %c0 = arith.constant 0 : index
    %c0_1 = arith.constant 0 : index
    %3 = vector.load %arg7[%c0, %c0_1] : memref<8x128xf32, #tpu.memory_space<vmem>>, vector<8x128xf32>
    %c0_2 = arith.constant 0 : index
    %c0_3 = arith.constant 0 : index
    %4 = vector.load %arg3[%c0_2, %c0_3] : memref<8x128xf32, #tpu.memory_space<vmem>>, vector<8x128xf32>
    %c0_4 = arith.constant 0 : index
    %c0_5 = arith.constant 0 : index
    %5 = vector.load %arg4[%c0_4, %c0_5] : memref<128x128xf32, #tpu.memory_space<vmem>>, vector<128x128xf32>
    %cst = arith.constant dense<0.000000e+00> : vector<8x128xf32>
    %6 = tpu.matmul %4, %5, %cst {dimension_numbers = #tpu.dot_dimension_numbers<[1], [0], [0], [1], [0, 0, 1, 1], [], []>} : vector<8x128xf32>, vector<128x128xf32>, vector<8x128xf32> -> vector<8x128xf32>
    %7 = arith.addf %3, %6 : vector<8x128xf32>
    %c0_6 = arith.constant 0 : index
    %c0_7 = arith.constant 0 : index
    %8 = vector.load %arg7[%c0_6, %c0_7] : memref<8x128xf32, #tpu.memory_space<vmem>>, vector<8x128xf32>
    tpu.vector_store %arg7[%c0_6, %c0_7], %7 {strides = array<i32>} : memref<8x128xf32, #tpu.memory_space<vmem>>, vector<8x128xf32>,
    %c0_i32_8 = arith.constant 0 : i32
    %9 = arith.cmpi eq, %arg2, %c0_i32_8 : i32
    %10 = arith.extui %9 : i1 to i32
    %c0_i32_9 = arith.constant 0 : i32
    %11 = arith.cmpi ne, %10, %c0_i32_9 : i32
    scf.if %11 {
      %c0_10 = arith.constant 0 : index
      %c0_11 = arith.constant 0 : index
      %12 = vector.load %arg7[%c0_10, %c0_11] : memref<8x128xf32, #tpu.memory_space<vmem>>, vector<8x128xf32>
      %c0_12 = arith.constant 0 : index
      %c0_13 = arith.constant 0 : index
      %13 = vector.load %arg6[%c0_12, %c0_13] : memref<8x128xf32, #tpu.memory_space<vmem>>, vector<8x128xf32>
      tpu.vector_store %arg6[%c0_12, %c0_13], %12 {strides = array<i32>} : memref<8x128xf32, #tpu.memory_space<vmem>>, vector<8x128xf32>,
    } else {
    }
    return
  }
  func.func @transform_0(%arg0: i32, %arg1: i32, %arg2: i32) -> (i32, i32) {
    %c0_i32 = arith.constant 0 : i32
    return %arg0, %arg2 : i32, i32
  }
  func.func @transform_1(%arg0: i32, %arg1: i32, %arg2: i32) -> (i32, i32) {
    %c0_i32 = arith.constant 0 : i32
    return %arg2, %arg1 : i32, i32
  }
  func.func @transform_2(%arg0: i32, %arg1: i32, %arg2: i32) -> (i32, i32) {
    %c0_i32 = arith.constant 0 : i32
    %c0_i32_0 = arith.constant 0 : i32
    return %c0_i32, %arg1 : i32, i32
  }
  func.func @transform_3(%arg0: i32, %arg1: i32, %arg2: i32) -> (i32, i32) {
    %c0_i32 = arith.constant 0 : i32
    return %arg0, %arg1 : i32, i32
  }
}

</mosaic_0001>

<llo_original>
// kernel: tpu_custom_call.1
$region0: #{tpu_custom_call.1}
  #allocation0 [shape = 'u32[]', space=smem, size = 0x4, offset = 0x4, fixed_abs, tag = 'smem constant byte address 0x4 - core index']
  #allocation1 [shape = 'u32[144,128]{1,0:T(1,128)}', space=vmem, size = 0x12000, scoped, tag = 'internal scratch']
  #allocation2 [shape = 'f32[8,128]{1,0:T(8,128)}', space=vmem, size = 0x1000, scoped, tag = 'scratch operand']
  %s0 = inlined_call_operand.hbm [shape: f32[8,128], index: 0, kind: input, shape index: {}]
  %s1 = inlined_call_operand.hbm [shape: f32[128,128], index: 1, kind: input, shape index: {}]
  %s2 = inlined_call_operand.vmem [shape: f32[1,128], index: 2, kind: input, shape index: {}]
  %s3 = inlined_call_operand.hbm [shape: f32[8,128], index: 3, kind: output, shape index: {}]
  %s4 = sld [smem:[#allocation0]]
  $region38: #{tpu_custom_call.1} parent=0
    _
  %s6 = ssub.s32 1, %s4
  %s7 = scalar_select 0, %s6, %s4
  $region1: #{tpu_custom_call.1} parent=0
    #allocation3 [shape = 'u8[4096]{0}', space=vmem, size = 0x1000, scoped, tag = 'input window, operand 0, single buffered']
    #allocation4 [shape = 's32[1]{0}', space=sflag, size = 0x4, scoped, tag = 'scoped memory for tpu_custom_call.1']
    #allocation5 [shape = 's32[1]{0}', space=sflag, size = 0x4, scoped, tag = 'scoped memory for tpu_custom_call.1']
    #allocation6 [shape = 'u8[65536]{0}', space=vmem, size = 0x10000, scoped, tag = 'input window, operand 1, single buffered']
    #allocation7 [shape = 's32[1]{0}', space=sflag, size = 0x4, scoped, tag = 'scoped memory for tpu_custom_call.1']
    #allocation8 [shape = 'u8[4096]{0}', space=vmem, size = 0x1000, scoped, tag = 'output window, operand 0, single buffered']
    %8 = vsyncpa [#allocation4], 0
    %9 = vsyncpa [#allocation7], 0
    %10 = vsyncpa [#allocation5], 0
    // Predicated region
    $region2: #{tpu_custom_call.1} parent=1 // pred_check
      _
    $region3: #{tpu_custom_call.1} parent=1 // pred_check_branch
      %12 = sbr.rel (0) target = $region5
    $region4: #{tpu_custom_call.1} parent=1 // pred_region
      %s14 = ssub.s32 128, 128
      %15 = vsyncadd [#allocation4], %s14
      %s17 = sshll.u32 [#allocation3], 4
      %s18 = int_to_ptr.vmem [resolvable:$true] %s17
      %20 = dma.hbm_to_vmem [thread:$0]  %s0, 128, %s18, [#allocation4]
    $region5: #{tpu_custom_call.1} parent=1 // pred_fallthru
      _
    // Predicated region
    $region6: #{tpu_custom_call.1} parent=1 // pred_check
      _
    $region7: #{tpu_custom_call.1} parent=1 // pred_check_branch
      %22 = sbr.rel (0) target = $region9
    $region8: #{tpu_custom_call.1} parent=1 // pred_region
      %s24 = ssub.s32 2048, 2048
      %25 = vsyncadd [#allocation7], %s24
      %s26 = sshll.u32 [#allocation6], 4
      %s27 = int_to_ptr.vmem [resolvable:$true] %s26
      %32 = dma.hbm_to_vmem [thread:$0]  %s1, 2048, %s27, [#allocation7], 128, 128, 8
    $region9: #{tpu_custom_call.1} parent=1 // pred_fallthru
      _
    // Predicated region
    $region10: #{tpu_custom_call.1} parent=1 // pred_check
      _
    $region11: #{tpu_custom_call.1} parent=1 // pred_check_branch
      %34 = sbr.rel (0) target = $region13
    $region12: #{tpu_custom_call.1} parent=1 // pred_region
      _
    $region13: #{tpu_custom_call.1} parent=1 // pred_fallthru
      _
    // Predicated region
    $region14: #{tpu_custom_call.1} parent=1 // pred_check
      _
    $region15: #{tpu_custom_call.1} parent=1 // pred_check_branch
      %36 = sbr.rel (0) target = $region17
    $region16: #{tpu_custom_call.1} parent=1 // pred_region
      %37 = dma.done [#allocation4], 128
    $region17: #{tpu_custom_call.1} parent=1 // pred_fallthru
      _
    // Predicated region
    $region18: #{tpu_custom_call.1} parent=1 // pred_check
      _
    $region19: #{tpu_custom_call.1} parent=1 // pred_check_branch
      %39 = sbr.rel (0) target = $region21
    $region20: #{tpu_custom_call.1} parent=1 // pred_region
      %40 = dma.done [#allocation7], 2048
    $region21: #{tpu_custom_call.1} parent=1 // pred_fallthru
      _
    %p41 = scmp.eq.s32.totalorder 0, 0
    // Predicated region
    $region22: #{tpu_custom_call.1} parent=1 // pred_check
      %p42 = pneg %p41
    $region23: #{tpu_custom_call.1} parent=1 // pred_check_branch
      %44 = sbr.rel (%p42) target = $region25
    $region24: #{tpu_custom_call.1} parent=1 // pred_region
      %v45 = vld [vmem:[%s2] sm:$0x1]
      %v47 = vlaneseq
      %v48 = vshrl.u32 %v47, 7
      %v49 = vsub.s32 0, %v48
      %v50 = vrot.slane %v45, %v49
      %52 = vst [vmem:[#allocation2] sm:$0xff] %v50
    $region25: #{tpu_custom_call.1} parent=1 // pred_fallthru
      _
    %v53 = vld [vmem:[#allocation2] sm:$0xff]
    %v54 = vld [vmem:[#allocation3] sm:$0xff]
    %v55 = vld [vmem:[#allocation6] sm:$0xff]
    %v56 = vld [vmem:[#allocation6 + $0x8] sm:$0xff]
    %v57 = vld [vmem:[#allocation6 + $0x10] sm:$0xff]
    %v58 = vld [vmem:[#allocation6 + $0x18] sm:$0xff]
    %v59 = vld [vmem:[#allocation6 + $0x20] sm:$0xff]
    %v60 = vld [vmem:[#allocation6 + $0x28] sm:$0xff]
    %v61 = vld [vmem:[#allocation6 + $0x30] sm:$0xff]
    %v62 = vld [vmem:[#allocation6 + $0x38] sm:$0xff]
    %v63 = vld [vmem:[#allocation6 + $0x40] sm:$0xff]
    %v64 = vld [vmem:[#allocation6 + $0x48] sm:$0xff]
    %v65 = vld [vmem:[#allocation6 + $0x50] sm:$0xff]
    %v66 = vld [vmem:[#allocation6 + $0x58] sm:$0xff]
    %v67 = vld [vmem:[#allocation6 + $0x60] sm:$0xff]
    %v68 = vld [vmem:[#allocation6 + $0x68] sm:$0xff]
    %v69 = vld [vmem:[#allocation6 + $0x70] sm:$0xff]
    %v70 = vld [vmem:[#allocation6 + $0x78] sm:$0xff]
    %71 = vmatprep.subr.mxu0 0.0
    %72 = vmatpush1.msra.mxu0 %v70
    %73 = vmatprep.subr.mxu0 0.0
    %74 = vmatpush1.msra.mxu0 %v69
    %75 = vmatprep.subr.mxu0 0.0
    %76 = vmatpush1.msra.mxu0 %v68
    %77 = vmatprep.subr.mxu0 0.0
    %78 = vmatpush1.msra.mxu0 %v67
    %79 = vmatprep.subr.mxu0 0.0
    %80 = vmatpush1.msra.mxu0 %v66
    %81 = vmatprep.subr.mxu0 0.0
    %82 = vmatpush1.msra.mxu0 %v65
    %83 = vmatprep.subr.mxu0 0.0
    %84 = vmatpush1.msra.mxu0 %v64
    %85 = vmatprep.subr.mxu0 0.0
    %86 = vmatpush1.msra.mxu0 %v63
    %87 = vmatprep.subr.mxu0 0.0
    %88 = vmatpush1.msra.mxu0 %v62
    %89 = vmatprep.subr.mxu0 0.0
    %90 = vmatpush1.msra.mxu0 %v61
    %91 = vmatprep.subr.mxu0 0.0
    %92 = vmatpush1.msra.mxu0 %v60
    %93 = vmatprep.subr.mxu0 0.0
    %94 = vmatpush1.msra.mxu0 %v59
    %95 = vmatprep.subr.mxu0 0.0
    %96 = vmatpush1.msra.mxu0 %v58
    %97 = vmatprep.subr.mxu0 0.0
    %98 = vmatpush1.msra.mxu0 %v57
    %99 = vmatprep.subr.mxu0 0.0
    %100 = vmatpush1.msra.mxu0 %v56
    %101 = vmatprep.subr.mxu0 0.0
    %102 = vmatpush1.msra.mxu0 %v55
    %103 = vmatprep.subr.mxu0 0.0
    %104 = vmatpush2.msra.mxu0 0.0
    %105 = vmatprep.subr.mxu0 0.0
    %106 = vmatpush2.msra.mxu0 0.0
    %107 = vmatprep.subr.mxu0 0.0
    %108 = vmatpush2.msra.mxu0 0.0
    %109 = vmatprep.subr.mxu0 0.0
    %110 = vmatpush2.msra.mxu0 0.0
    %111 = vmatprep.subr.mxu0 0.0
    %112 = vmatpush2.msra.mxu0 0.0
    %113 = vmatprep.subr.mxu0 0.0
    %114 = vmatpush2.msra.mxu0 0.0
    %115 = vmatprep.subr.mxu0 0.0
    %116 = vmatpush2.msra.mxu0 0.0
    %117 = vmatprep.subr.mxu0 0.0
    %118 = vmatpush2.msra.mxu0 0.0
    %119 = vmatprep.subr.mxu0 0.0
    %120 = vmatpush2.msra.mxu0 0.0
    %121 = vmatprep.subr.mxu0 0.0
    %122 = vmatpush2.msra.mxu0 0.0
    %123 = vmatprep.subr.mxu0 0.0
    %124 = vmatpush2.msra.mxu0 0.0
    %125 = vmatprep.subr.mxu0 0.0
    %126 = vmatpush2.msra.mxu0 0.0
    %127 = vmatprep.subr.mxu0 0.0
    %128 = vmatpush2.msra.mxu0 0.0
    %129 = vmatprep.subr.mxu0 0.0
    %130 = vmatpush2.msra.mxu0 0.0
    %131 = vmatprep.subr.mxu0 0.0
    %132 = vmatpush2.msra.mxu0 0.0
    %133 = vmatprep.subr.mxu0 0.0
    %134 = vmatpush2.msra.mxu0 0.0
    %135 = vmatprep.mubr.f32.mxu0 0.0
    %136 = vmatmul.mubr.f32.gmra.mxu0 %v54
    %v137 = vpop.f32.mrf.mxu0
    %v138 = vadd.f32 0.0, %v137
    %v139 = vpop.f32.mrf.mxu0
    %140 = vdwg.mxu0
    %v141 = vadd.f32 %v53, %v138
    %142 = vst [vmem:[#allocation2] sm:$0xff] %v141
    // Predicated region
    $region26: #{tpu_custom_call.1} parent=1 // pred_check
      %p143 = pneg %p41
    $region27: #{tpu_custom_call.1} parent=1 // pred_check_branch
      %145 = sbr.rel (%p143) target = $region29
    $region28: #{tpu_custom_call.1} parent=1 // pred_region
      %v146 = vld [vmem:[#allocation2] sm:$0xff]
      %147 = vst [vmem:[#allocation8] sm:$0xff] %v146
    $region29: #{tpu_custom_call.1} parent=1 // pred_fallthru
      _
    // Predicated region
    $region30: #{tpu_custom_call.1} parent=1 // pred_check
      _
    $region31: #{tpu_custom_call.1} parent=1 // pred_check_branch
      %149 = sbr.rel (0) target = $region33
    $region32: #{tpu_custom_call.1} parent=1 // pred_region
      %s151 = ssub.s32 128, 128
      %152 = vsyncadd [#allocation5], %s151
      %s154 = sshll.u32 [#allocation8], 4
      %s155 = int_to_ptr.vmem [resolvable:$true] %s154
      %157 = dma.vmem_to_hbm [thread:$0]  %s155, 128, %s3, [#allocation5]
    $region33: #{tpu_custom_call.1} parent=1 // pred_fallthru
      _
    // Predicated region
    $region34: #{tpu_custom_call.1} parent=1 // pred_check
      _
    $region35: #{tpu_custom_call.1} parent=1 // pred_check_branch
      %159 = sbr.rel (0) target = $region37
    $region36: #{tpu_custom_call.1} parent=1 // pred_region
      %160 = dma.done [#allocation5], 128
    $region37: #{tpu_custom_call.1} parent=1 // pred_fallthru
      _
    %161 = vsyncpa [#allocation4], 1
    %162 = vsyncpa [#allocation7], 1
    %163 = vsyncpa [#allocation5], 1

</llo_original>
